<compile_context>
chip_gen: v5e
topology: v5e:2x2
jax: 0.10.0
libtpu: 0.0.40
codegen_flags: <defaults>
</compile_context>

<pallas_src>
import jax
import jax.numpy as jnp
from jax.experimental import pallas as pl
from jax.experimental.pallas import tpu as pltpu


def _round_up(a, m):
    return ((a + m - 1) // m) * m


def _pad8(n):
    return _round_up(n, 8)


# ----------------------------------------------------------------------------
# Pallas kernel (all per-sample data is [features, TB]: batch on the lane axis)
# ----------------------------------------------------------------------------
def _make_nfm_kernel(n_layers, relu_flags, D):
    """Build the kernel for a fixed tower depth / embedding dim (trace-time consts)."""

    def kernel(xdsT_ref, ueT_ref, ieT_ref, wfT_ref, wideb_ref, *rest):
        # rest = (W_0, b_0, ..., W_{n-1}, b_{n-1}, out_w, out_b, out_ref)
        layer_refs = rest[:2 * n_layers]
        outw_ref = rest[2 * n_layers]
        outb_ref = rest[2 * n_layers + 1]
        out_ref = rest[2 * n_layers + 2]

        # FM stage stays in f32 even when the streams arrive as bf16.
        ueT = ueT_ref[...].astype(jnp.float32)                        # [D, TB]
        ieT = ieT_ref[...].astype(jnp.float32)                        # [D, TB]

        # ONE fused MXU pass: block-diagonal age/gender/occupation/movie tables
        # (transposed) with the wide Linear(43->1) + user/item bias as row 4D.
        fusedT = jnp.dot(wfT_ref[...], xdsT_ref[...],
                         preferred_element_type=jnp.float32)          # [4D+1, TB]
        ageT = fusedT[0 * D:1 * D, :]
        genT = fusedT[1 * D:2 * D, :]
        occT = fusedT[2 * D:3 * D, :]
        movT = fusedT[3 * D:4 * D, :]
        wideT = fusedT[4 * D:4 * D + 1, :] + wideb_ref[0]             # [1, TB]

        # Pairwise FM interaction via the sum-of-squares identity (kept in f32):
        #   sum_{i<j} f_i * f_j = 0.5 * ((sum_i f_i)^2 - sum_i f_i^2)
        s = ueT + ieT + ageT + genT + occT + movT
        sq = (ueT * ueT + ieT * ieT + ageT * ageT + genT * genT
              + occT * occT + movT * movT)
        deepT = 0.5 * (s * s - sq)                                    # [D, TB]

        # DNN tower (first layer already folded with the D->H0 linear).
        for l in range(n_layers):
            w = layer_refs[2 * l][...]                                # [H_out, H_in]
            b = layer_refs[2 * l + 1][...]                            # [H_out, 1]
            z = jnp.dot(w, deepT, preferred_element_type=jnp.float32) + b
            deepT = jnp.maximum(z, 0.0) if relu_flags[l] else z       # [H_out, TB]

        # Output Linear(2 -> 1) over cat([wide, deep]) decomposed (no 1-lane cat):
        #   cat([w, d]) @ Wout + b == w * Wout[0] + d * Wout[1] + b
        logitT = wideT * outw_ref[0] + deepT * outw_ref[1] + outb_ref[0]
        out_ref[...] = jax.nn.sigmoid(logitT)                         # [1, TB]

    return kernel


# ----------------------------------------------------------------------------
# Wrapper helpers
# ----------------------------------------------------------------------------
def _pack_fused_weight_T(p, D, dtype):
    """[4D+1, 45]: transposed block-diagonal embedding tables, plus a wide row
    = wide_w for the 43 dense columns and 1.0 for the ub / ib columns."""
    W = jnp.zeros((4 * D + 1, 45), jnp.float32)
    W = W.at[0 * D:1 * D, 0:1].set(p["age_embedding"].T)
    W = W.at[1 * D:2 * D, 1:3].set(p["gender_embedding"].T)
    W = W.at[2 * D:3 * D, 3:24].set(p["occupation_embedding"].T)
    W = W.at[3 * D:4 * D, 24:43].set(p["movie_embedding"].T)
    W = W.at[4 * D, 0:43].set(p["wide_w"][:, 0])
    W = W.at[4 * D, 43].set(1.0)   # + user bias
    W = W.at[4 * D, 44].set(1.0)   # + item bias
    return W.astype(dtype)


def _fold_layers(p):
    """Fold linear(D->H0) into dnn[0] (no ReLU between them in the module);
    return transposed layers [(W [out,in], b [out,1], relu)]."""
    lin_w, lin_b = p["linear_w"], p["linear_b"]
    dnn = p["dnn"]
    layers = []
    if len(dnn) == 0:
        layers.append((lin_w.T, lin_b.T, False))
    else:
        w0, b0 = dnn[0]
        layers.append(((lin_w @ w0).T, (lin_b @ w0 + b0).T, True))
        for (w, b) in dnn[1:]:
            layers.append((w.T, b.T, True))
    return layers


def _vmem_estimate(TB, D, layers, stream_itemsize):
    """Rough per-tile VMEM bytes: double-buffered streams + resident weights
    (double-buffered by the pipeline) + live f32 temporaries."""
    stream_rows_bytes = (_pad8(45) + 2 * _pad8(D)) * stream_itemsize + 8 * 4
    streams = 2 * TB * stream_rows_bytes
    weights = 2 * (_pad8(4 * D + 1) * 128 * stream_itemsize)
    for (w, b, _) in layers:
        weights += 2 * 4 * (int(w.size) + _pad8(int(b.shape[0])) * 128)
    max_h = max(_pad8(int(w.shape[0])) for (w, _, _) in layers)
    temps = TB * 4 * (_pad8(4 * D + 1) + 4 * _pad8(D) + 2 * max_h)
    return streams + weights + temps


# ----------------------------------------------------------------------------
# Forward
# ----------------------------------------------------------------------------
def nfm_forward(x, p, *, tb=2048, stream_dtype=jnp.float32):
    """x: [B, 45] float32.  Columns: 0=user_id, 1=item_id, 2=age,
    3:5=gender(2), 5:26=occupation(21), 26:45=movie genres(19)."""
    B, F = x.shape
    assert F == 45, x.shape
    D = p["user_embedding"].shape[1]

    # --- glue: data-dependent embedding gathers (nn.Embedding lookups).
    # NOTE: ids carried through float32 x are exact only for ids < 2^24.
    # TODO(synk): move the uid/iid gathers in-kernel (PrefetchScalarGridSpec +
    # per-row DMA gather) to skip this HBM round trip for large embedding tables.
    uid = x[:, 0].astype(jnp.int32)
    iid = x[:, 1].astype(jnp.int32)
    ueT = p["user_embedding"][uid].T.astype(stream_dtype)       # [D, B]
    ieT = p["item_embedding"][iid].T.astype(stream_dtype)       # [D, B]
    ub = p["user_bias"][uid]                                    # [B, 1]
    ib = p["item_bias"][iid]                                    # [B, 1]
    # dense slab: 43 dense features + ub + ib, transposed to [45, B]
    xdsT = jnp.concatenate([x[:, 2:], ub, ib], axis=1).T.astype(stream_dtype)

    layers = _fold_layers(p)
    assert layers[-1][0].shape[0] == 1, (
        "NFM's output Linear(2->1) requires the deep tower to end at width 1 "
        "(hidden_units[-1] == 1)")
    n_layers = len(layers)
    relu_flags = tuple(bool(r) for (_, _, r) in layers)

    # --- batch tiling: TB lanes per grid step, multiple of 128.
    sbytes = jnp.dtype(stream_dtype).itemsize
    TB = min(_round_up(tb, 128), _round_up(B, 128))
    if B >= 256:
        # keep >= 2 grid tiles so dimension_semantics=("parallel",) can spread
        # batch tiles across both TensorCores (v7x megacore).
        TB = min(TB, _round_up((B + 1) // 2, 128))
    # keep double-buffered streams + temporaries comfortably inside VMEM
    # (v7x: 64 MiB physical / 32 MiB default scoped; v5e: 16 MiB default scoped).
    while TB > 128 and _vmem_estimate(TB, D, layers, sbytes) > (40 << 20):
        TB = max(128, _round_up(TB // 2, 128))
    Bp = _round_up(B, TB)
    if Bp != B:
        pad = ((0, 0), (0, Bp - B))
        xdsT = jnp.pad(xdsT, pad)
        ueT = jnp.pad(ueT, pad)
        ieT = jnp.pad(ieT, pad)

    w_fused_T = _pack_fused_weight_T(p, D, stream_dtype)
    wide_b = p["wide_b"].reshape(-1).astype(jnp.float32)   # (1,) -> SMEM
    out_w = p["out_w"].reshape(-1).astype(jnp.float32)     # (2,) -> SMEM
    out_b = p["out_b"].reshape(-1).astype(jnp.float32)     # (1,) -> SMEM

    inputs = [xdsT, ueT, ieT, w_fused_T, wide_b]
    for (w, b, _) in layers:
        inputs += [w, b]
    inputs += [out_w, out_b]

    smem = pltpu.MemorySpace.SMEM

    def streamed(a):   # per-sample [features, Bp] streams, batch on the lane axis
        return pl.BlockSpec((a.shape[0], TB), lambda i: (0, i))

    def resident(a):   # weights: same block every step -> stay VMEM-resident
        # TODO(synk): pipeline_mode=pl.Buffered(1) (or a one-time DMA into scratch)
        # would halve the resident footprint for production-size hidden_units.
        return pl.BlockSpec(a.shape, lambda i, _nd=a.ndim: (0,) * _nd)

    in_specs = [streamed(xdsT), streamed(ueT), streamed(ieT),
                resident(w_fused_T),
                pl.BlockSpec(memory_space=smem)]            # wide_b
    for (w, b, _) in layers:
        in_specs += [resident(w), resident(b)]
    in_specs += [pl.BlockSpec(memory_space=smem),           # out_w
                 pl.BlockSpec(memory_space=smem)]           # out_b

    # advisory cost estimate for the XLA scheduler
    flops = 2 * Bp * 45 * (4 * D + 1) + 14 * Bp * D
    for (w, _, _) in layers:
        flops += 2 * Bp * int(w.shape[0]) * int(w.shape[1])
    bytes_accessed = sum(int(a.size) * a.dtype.itemsize for a in inputs) + Bp * 4

    vmem_limit = int(min(64 << 20,
                         max(32 << 20,
                             _vmem_estimate(TB, D, layers, sbytes) + (8 << 20))))

    kernel = _make_nfm_kernel(n_layers, relu_flags, D)
    out = pl.pallas_call(
        kernel,
        out_shape=jax.ShapeDtypeStruct((1, Bp), jnp.float32),
        grid=(Bp // TB,),
        in_specs=in_specs,
        out_specs=pl.BlockSpec((1, TB), lambda i: (0, i)),
        compiler_params=pltpu.CompilerParams(
            dimension_semantics=("parallel",),
            vmem_limit_bytes=vmem_limit),
        cost_estimate=pl.CostEstimate(
            flops=int(flops), transcendentals=int(Bp),
            bytes_accessed=int(bytes_accessed)),
    )(*inputs)
    return out[0, :B][:, None]


# ----------------------------------------------------------------------------
# Pure-JAX reference (mirrors the PyTorch forward, pairwise FM loop)
# ----------------------------------------------------------------------------
def nfm_reference(x, p):
    uid = x[:, 0].astype(jnp.int32)
    iid = x[:, 1].astype(jnp.int32)
    ue = p["user_embedding"][uid]
    ie = p["item_embedding"][iid]
    age = x[:, 2:3] @ p["age_embedding"]
    gen = x[:, 3:5] @ p["gender_embedding"]
    occ = x[:, 5:26] @ p["occupation_embedding"]
    mov = x[:, 26:45] @ p["movie_embedding"]
    feats = [ue, ie, age, gen, occ, mov]
    cross = jnp.zeros_like(ue)
    for i in range(len(feats)):
        for j in range(i + 1, len(feats)):
            cross = cross + feats[i] * feats[j]
    wide = p["user_bias"][uid] + p["item_bias"][iid] + x[:, 2:] @ p["wide_w"] + p["wide_b"]
    deep = cross @ p["linear_w"] + p["linear_b"]
    for (w, b) in p["dnn"]:
        deep = jax.nn.relu(deep @ w + b)
    comb = jnp.concatenate([wide, deep], axis=1)
    return jax.nn.sigmoid(comb @ p["out_w"] + p["out_b"])


# ----------------------------------------------------------------------------
# Deterministic parameter init (shapes from NFM.__init__, xavier-normal style)
# ----------------------------------------------------------------------------
def _xavier(key, shape):
    std = (2.0 / (shape[0] + shape[1])) ** 0.5
    return std * jax.random.normal(key, shape, dtype=jnp.float32)


def init_params(key, num_users, num_items, hidden_units, embedding_dim):
    D = embedding_dim
    keys = jax.random.split(key, 16 + 2 * len(hidden_units))
    ki = iter(range(len(keys)))
    p = {}
    p["user_embedding"] = _xavier(keys[next(ki)], (num_users, D))
    p["item_embedding"] = _xavier(keys[next(ki)], (num_items, D))
    p["age_embedding"] = _xavier(keys[next(ki)], (1, D))
    p["gender_embedding"] = _xavier(keys[next(ki)], (2, D))
    p["occupation_embedding"] = _xavier(keys[next(ki)], (21, D))
    p["movie_embedding"] = _xavier(keys[next(ki)], (19, D))
    p["user_bias"] = _xavier(keys[next(ki)], (num_users, 1))
    p["item_bias"] = _xavier(keys[next(ki)], (num_items, 1))
    # linear: embedding_dim -> hidden_units[0]   (stored as [in, out])
    p["linear_w"] = _xavier(keys[next(ki)], (D, hidden_units[0]))
    p["linear_b"] = _xavier(keys[next(ki)], (1, hidden_units[0]))
    # dnn tower
    p["dnn"] = []
    for lin, lout in zip(hidden_units[:-1], hidden_units[1:]):
        w = _xavier(keys[next(ki)], (lin, lout))
        b = _xavier(keys[next(ki)], (1, lout))
        p["dnn"].append((w, b))
    # wide: Linear(1+2+21+19 = 43 -> 1)
    p["wide_w"] = _xavier(keys[next(ki)], (43, 1))
    p["wide_b"] = _xavier(keys[next(ki)], (1, 1))
    # output: Linear(2 -> 1)
    p["out_w"] = _xavier(keys[next(ki)], (2, 1))
    p["out_b"] = _xavier(keys[next(ki)], (1, 1))
    return p


def _make_x(key, B, num_users, num_items):
    k_u, k_i, k_age, k_g, k_o, k_m = jax.random.split(key, 6)
    uid = jax.random.randint(k_u, (B,), 0, num_users).astype(jnp.float32)
    iid = jax.random.randint(k_i, (B,), 0, num_items).astype(jnp.float32)
    age = jax.random.uniform(k_age, (B, 1), dtype=jnp.float32)
    gender = jax.nn.one_hot(jax.random.randint(k_g, (B,), 0, 2), 2, dtype=jnp.float32)
    occ = jax.nn.one_hot(jax.random.randint(k_o, (B,), 0, 21), 21, dtype=jnp.float32)
    movie = (jax.random.uniform(k_m, (B, 19)) < 0.3).astype(jnp.float32)
    return jnp.concatenate([uid[:, None], iid[:, None], age, gender, occ, movie],
                           axis=1)


# ----------------------------------------------------------------------------
if __name__ == "__main__":
    key = jax.random.PRNGKey(0)
    num_users, num_items, D = 8, 12, 16
    hidden_units = [32, 16, 1]   # last must be 1 (module cats with the [B,1] wide output)

    k_param, k_x1, k_x2 = jax.random.split(key, 3)
    params = init_params(k_param, num_users, num_items, hidden_units, D)

    # small single-tile batch
    x = _make_x(k_x1, 20, num_users, num_items)
    ref = nfm_reference(x, params)
    out = jax.block_until_ready(nfm_forward(x, params))
    assert out.shape == (20, 1), out.shape
    assert jnp.allclose(out, ref, atol=2e-4, rtol=2e-4), (out, ref)

    # larger batch: exercises the multi-tile grid (TB=256 -> 2 tiles) + padding (300 -> 512)
    xl = _make_x(k_x2, 300, num_users, num_items)
    refl = nfm_reference(xl, params)
    outl = jax.block_until_ready(nfm_forward(xl, params))
    assert outl.shape == (300, 1), outl.shape
    assert jnp.allclose(outl, refl, atol=2e-4, rtol=2e-4), (outl, refl)

    # bf16-streamed path (halves HBM traffic of the per-sample streams)
    outb = jax.block_until_ready(nfm_forward(x, params, stream_dtype=jnp.bfloat16))
    assert outb.shape == (20, 1), outb.shape
    assert jnp.allclose(outb, ref, atol=2e-2, rtol=2e-2), (outb, ref)

    print("KERNEL_OK")
</pallas_src>

<mosaic_0001>
module attributes {stable_mosaic.version = 11 : i64} {
  func.func @kernel(%arg0: i32, %arg1: memref<45x128xf32, #tpu.memory_space<vmem>>, %arg2: memref<16x128xf32, #tpu.memory_space<vmem>>, %arg3: memref<16x128xf32, #tpu.memory_space<vmem>>, %arg4: memref<65x45xf32, #tpu.memory_space<vmem>>, %arg5: memref<1xf32, #tpu.memory_space<smem>>, %arg6: memref<16x16xf32, #tpu.memory_space<vmem>>, %arg7: memref<16x1xf32, #tpu.memory_space<vmem>>, %arg8: memref<1x16xf32, #tpu.memory_space<vmem>>, %arg9: memref<1x1xf32, #tpu.memory_space<vmem>>, %arg10: memref<2xf32, #tpu.memory_space<smem>>, %arg11: memref<1xf32, #tpu.memory_space<smem>>, %arg12: memref<1x128xf32, #tpu.memory_space<vmem>>) attributes {dimension_semantics = [#tpu.dimension_semantics<parallel>], iteration_bounds = array<i64: 1>, scalar_prefetch = 0 : i64, scratch_operands = 0 : i64, tpu.core_type = #tpu.core_type<tc>, window_params = [{transform_indices = @transform_0, window_bounds = array<i64: 45, 128>}, {transform_indices = @transform_1, window_bounds = array<i64: 16, 128>}, {transform_indices = @transform_2, window_bounds = array<i64: 16, 128>}, {pipeline_mode = #tpu.pipeline_mode<synchronous>, transform_indices = @transform_3, window_bounds = array<i64: 65, 45>}, {transform_indices = @transform_4, window_bounds = array<i64: 1>}, {pipeline_mode = #tpu.pipeline_mode<synchronous>, transform_indices = @transform_5, window_bounds = array<i64: 16, 16>}, {pipeline_mode = #tpu.pipeline_mode<synchronous>, transform_indices = @transform_6, window_bounds = array<i64: 16, 1>}, {pipeline_mode = #tpu.pipeline_mode<synchronous>, transform_indices = @transform_7, window_bounds = array<i64: 1, 16>}, {pipeline_mode = #tpu.pipeline_mode<synchronous>, transform_indices = @transform_8, window_bounds = array<i64: 1, 1>}, {transform_indices = @transform_9, window_bounds = array<i64: 2>}, {transform_indices = @transform_10, window_bounds = array<i64: 1>}, {transform_indices = @transform_11, window_bounds = array<i64: 1, 128>}]} {
    %c0 = arith.constant 0 : index
    %c0_0 = arith.constant 0 : index
    %0 = vector.load %arg2[%c0, %c0_0] : memref<16x128xf32, #tpu.memory_space<vmem>>, vector<16x128xf32>
    %c0_1 = arith.constant 0 : index
    %c0_2 = arith.constant 0 : index
    %1 = vector.load %arg3[%c0_1, %c0_2] : memref<16x128xf32, #tpu.memory_space<vmem>>, vector<16x128xf32>
    %c0_3 = arith.constant 0 : index
    %c0_4 = arith.constant 0 : index
    %2 = vector.load %arg4[%c0_3, %c0_4] : memref<65x45xf32, #tpu.memory_space<vmem>>, vector<65x45xf32>
    %c0_5 = arith.constant 0 : index
    %c0_6 = arith.constant 0 : index
    %3 = vector.load %arg1[%c0_5, %c0_6] : memref<45x128xf32, #tpu.memory_space<vmem>>, vector<45x128xf32>
    %cst = arith.constant dense<0.000000e+00> : vector<65x128xf32>
    %4 = tpu.matmul %2, %3, %cst {dimension_numbers = #tpu.dot_dimension_numbers<[1], [0], [0], [1], [0, 0, 1, 1], [], []>} : vector<65x45xf32>, vector<45x128xf32>, vector<65x128xf32> -> vector<65x128xf32>
    %5 = vector.extract_strided_slice %4 {offsets = [0, 0], sizes = [16, 128], strides = [1, 1]} : vector<65x128xf32> to vector<16x128xf32>
    %6 = vector.extract_strided_slice %4 {offsets = [16, 0], sizes = [16, 128], strides = [1, 1]} : vector<65x128xf32> to vector<16x128xf32>
    %7 = vector.extract_strided_slice %4 {offsets = [32, 0], sizes = [16, 128], strides = [1, 1]} : vector<65x128xf32> to vector<16x128xf32>
    %8 = vector.extract_strided_slice %4 {offsets = [48, 0], sizes = [16, 128], strides = [1, 1]} : vector<65x128xf32> to vector<16x128xf32>
    %9 = vector.extract_strided_slice %4 {offsets = [64, 0], sizes = [1, 128], strides = [1, 1]} : vector<65x128xf32> to vector<1x128xf32>
    %c0_7 = arith.constant 0 : index
    %10 = memref.load %arg5[%c0_7] : memref<1xf32, #tpu.memory_space<smem>>
    %11 = vector.broadcast %10 : f32 to vector<1x128xf32>
    %12 = arith.addf %9, %11 : vector<1x128xf32>
    %13 = arith.addf %0, %1 : vector<16x128xf32>
    %14 = arith.addf %13, %5 : vector<16x128xf32>
    %15 = arith.addf %14, %6 : vector<16x128xf32>
    %16 = arith.addf %15, %7 : vector<16x128xf32>
    %17 = arith.addf %16, %8 : vector<16x128xf32>
    %18 = arith.mulf %0, %0 : vector<16x128xf32>
    %19 = arith.mulf %1, %1 : vector<16x128xf32>
    %20 = arith.addf %18, %19 : vector<16x128xf32>
    %21 = arith.mulf %5, %5 : vector<16x128xf32>
    %22 = arith.addf %20, %21 : vector<16x128xf32>
    %23 = arith.mulf %6, %6 : vector<16x128xf32>
    %24 = arith.addf %22, %23 : vector<16x128xf32>
    %25 = arith.mulf %7, %7 : vector<16x128xf32>
    %26 = arith.addf %24, %25 : vector<16x128xf32>
    %27 = arith.mulf %8, %8 : vector<16x128xf32>
    %28 = arith.addf %26, %27 : vector<16x128xf32>
    %29 = arith.mulf %17, %17 : vector<16x128xf32>
    %30 = arith.subf %29, %28 : vector<16x128xf32>
    %cst_8 = arith.constant 5.000000e-01 : f32
    %31 = vector.broadcast %cst_8 : f32 to vector<16x128xf32>
    %32 = arith.mulf %31, %30 : vector<16x128xf32>
    %c0_9 = arith.constant 0 : index
    %c0_10 = arith.constant 0 : index
    %33 = vector.load %arg6[%c0_9, %c0_10] : memref<16x16xf32, #tpu.memory_space<vmem>>, vector<16x16xf32>
    %c0_11 = arith.constant 0 : index
    %c0_12 = arith.constant 0 : index
    %34 = vector.load %arg7[%c0_11, %c0_12] : memref<16x1xf32, #tpu.memory_space<vmem>>, vector<16x1xf32>
    %cst_13 = arith.constant dense<0.000000e+00> : vector<16x128xf32>
    %35 = tpu.matmul %33, %32, %cst_13 {dimension_numbers = #tpu.dot_dimension_numbers<[1], [0], [0], [1], [0, 0, 1, 1], [], []>} : vector<16x16xf32>, vector<16x128xf32>, vector<16x128xf32> -> vector<16x128xf32>
    %36 = vector.broadcast %34 : vector<16x1xf32> to vector<16x128xf32>
    %37 = arith.addf %35, %36 : vector<16x128xf32>
    %cst_14 = arith.constant 0.000000e+00 : f32
    %38 = vector.broadcast %cst_14 : f32 to vector<16x128xf32>
    %39 = arith.maximumf %37, %38 : vector<16x128xf32>
    %c0_15 = arith.constant 0 : index
    %c0_16 = arith.constant 0 : index
    %40 = vector.load %arg8[%c0_15, %c0_16] : memref<1x16xf32, #tpu.memory_space<vmem>>, vector<1x16xf32>
    %c0_17 = arith.constant 0 : index
    %c0_18 = arith.constant 0 : index
    %41 = vector.load %arg9[%c0_17, %c0_18] : memref<1x1xf32, #tpu.memory_space<vmem>>, vector<1x1xf32>
    %cst_19 = arith.constant dense<0.000000e+00> : vector<1x128xf32>
    %42 = tpu.matmul %40, %39, %cst_19 {dimension_numbers = #tpu.dot_dimension_numbers<[1], [0], [0], [1], [0, 0, 1, 1], [], []>} : vector<1x16xf32>, vector<16x128xf32>, vector<1x128xf32> -> vector<1x128xf32>
    %43 = vector.broadcast %41 : vector<1x1xf32> to vector<1x128xf32>
    %44 = arith.addf %42, %43 : vector<1x128xf32>
    %cst_20 = arith.constant 0.000000e+00 : f32
    %45 = vector.broadcast %cst_20 : f32 to vector<1x128xf32>
    %46 = arith.maximumf %44, %45 : vector<1x128xf32>
    %c0_21 = arith.constant 0 : index
    %47 = memref.load %arg10[%c0_21] : memref<2xf32, #tpu.memory_space<smem>>
    %48 = vector.broadcast %47 : f32 to vector<1x128xf32>
    %49 = arith.mulf %12, %48 : vector<1x128xf32>
    %c1 = arith.constant 1 : index
    %50 = memref.load %arg10[%c1] : memref<2xf32, #tpu.memory_space<smem>>
    %51 = vector.broadcast %50 : f32 to vector<1x128xf32>
    %52 = arith.mulf %46, %51 : vector<1x128xf32>
    %53 = arith.addf %49, %52 : vector<1x128xf32>
    %c0_22 = arith.constant 0 : index
    %54 = memref.load %arg11[%c0_22] : memref<1xf32, #tpu.memory_space<smem>>
    %55 = vector.broadcast %54 : f32 to vector<1x128xf32>
    %56 = arith.addf %53, %55 : vector<1x128xf32>
    %57 = arith.negf %56 : vector<1x128xf32>
    %58 = math.exp %57 : vector<1x128xf32>
    %cst_23 = arith.constant 1.000000e+00 : f32
    %59 = vector.broadcast %cst_23 : f32 to vector<1x128xf32>
    %60 = arith.addf %59, %58 : vector<1x128xf32>
    %61 = arith.divf %59, %60 : vector<1x128xf32>
    %c0_24 = arith.constant 0 : index
    %c0_25 = arith.constant 0 : index
    %62 = vector.load %arg12[%c0_24, %c0_25] : memref<1x128xf32, #tpu.memory_space<vmem>>, vector<1x128xf32>
    tpu.vector_store %arg12[%c0_24, %c0_25], %61 {strides = array<i32>} : memref<1x128xf32, #tpu.memory_space<vmem>>, vector<1x128xf32>,
    return
  }
  func.func @transform_0(%arg0: i32) -> (i32, i32) {
    %c0_i32 = arith.constant 0 : i32
    %c0_i32_0 = arith.constant 0 : i32
    return %c0_i32, %arg0 : i32, i32
  }
  func.func @transform_1(%arg0: i32) -> (i32, i32) {
    %c0_i32 = arith.constant 0 : i32
    %c0_i32_0 = arith.constant 0 : i32
    return %c0_i32, %arg0 : i32, i32
  }
  func.func @transform_2(%arg0: i32) -> (i32, i32) {
    %c0_i32 = arith.constant 0 : i32
    %c0_i32_0 = arith.constant 0 : i32
    return %c0_i32, %arg0 : i32, i32
  }
  func.func @transform_3(%arg0: i32) -> (i32, i32) {
    %c0_i32 = arith.constant 0 : i32
    %c0_i32_0 = arith.constant 0 : i32
    %c0_i32_1 = arith.constant 0 : i32
    return %c0_i32, %c0_i32_0 : i32, i32
  }
  func.func @transform_4(%arg0: i32) -> i32 {
    %c0_i32 = arith.constant 0 : i32
    %c0_i32_0 = arith.constant 0 : i32
    return %c0_i32 : i32
  }
  func.func @transform_5(%arg0: i32) -> (i32, i32) {
    %c0_i32 = arith.constant 0 : i32
    %c0_i32_0 = arith.constant 0 : i32
    %c0_i32_1 = arith.constant 0 : i32
    return %c0_i32, %c0_i32_0 : i32, i32
  }
  func.func @transform_6(%arg0: i32) -> (i32, i32) {
    %c0_i32 = arith.constant 0 : i32
    %c0_i32_0 = arith.constant 0 : i32
    %c0_i32_1 = arith.constant 0 : i32
    return %c0_i32, %c0_i32_0 : i32, i32
  }
  func.func @transform_7(%arg0: i32) -> (i32, i32) {
    %c0_i32 = arith.constant 0 : i32
    %c0_i32_0 = arith.constant 0 : i32
    %c0_i32_1 = arith.constant 0 : i32
    return %c0_i32, %c0_i32_0 : i32, i32
  }
  func.func @transform_8(%arg0: i32) -> (i32, i32) {
    %c0_i32 = arith.constant 0 : i32
    %c0_i32_0 = arith.constant 0 : i32
    %c0_i32_1 = arith.constant 0 : i32
    return %c0_i32, %c0_i32_0 : i32, i32
  }
  func.func @transform_9(%arg0: i32) -> i32 {
    %c0_i32 = arith.constant 0 : i32
    %c0_i32_0 = arith.constant 0 : i32
    return %c0_i32 : i32
  }
  func.func @transform_10(%arg0: i32) -> i32 {
    %c0_i32 = arith.constant 0 : i32
    %c0_i32_0 = arith.constant 0 : i32
    return %c0_i32 : i32
  }
  func.func @transform_11(%arg0: i32) -> (i32, i32) {
    %c0_i32 = arith.constant 0 : i32
    %c0_i32_0 = arith.constant 0 : i32
    return %c0_i32, %arg0 : i32, i32
  }
}

</mosaic_0001>

<llo_original>
// kernel: tpu_custom_call.1
$region0: #{tpu_custom_call.1}
  #allocation0 [shape = 'u32[]', space=smem, size = 0x4, offset = 0x4, fixed_abs, tag = 'smem constant byte address 0x4 - core index']
  #allocation1 [shape = 'u32[72,128]{1,0:T(1,128)}', space=vmem, size = 0x9000, scoped, tag = 'internal scratch']
  #allocation2 [shape = 'f32[1]{0:T(128)S(6)}', space=smem, size = 0x200, scoped, tag = 'scoped memory for tpu_custom_call.1']
  #allocation3 [shape = 'f32[1,1]{1,0:T(1,128)S(1)}', space=vmem, size = 0x200, scoped, tag = 'scoped memory for tpu_custom_call.1']
  #allocation4 [shape = 'f32[1]{0:T(128)S(6)}', space=smem, size = 0x200, scoped, tag = 'scoped memory for tpu_custom_call.1']
  %s0 = inlined_call_operand.vmem [shape: f32[45,128], index: 0, kind: input, shape index: {}]
  %s1 = inlined_call_operand.vmem [shape: f32[16,128], index: 1, kind: input, shape index: {}]
  %s2 = inlined_call_operand.vmem [shape: f32[16,128], index: 2, kind: input, shape index: {}]
  %s3 = inlined_call_operand.vmem [shape: f32[65,45], index: 3, kind: input, shape index: {}]
  %s4 = inlined_call_operand.<no memory space> [shape: f32[1], index: 4, kind: input, shape index: {}]
  %s5 = inlined_call_operand.vmem [shape: f32[16,16], index: 5, kind: input, shape index: {}]
  %s6 = inlined_call_operand.vmem [shape: f32[16,1], index: 6, kind: input, shape index: {}]
  %s7 = inlined_call_operand.vmem [shape: f32[1,16], index: 7, kind: input, shape index: {}]
  %s8 = inlined_call_operand.<no memory space> [shape: f32[1,1], index: 8, kind: input, shape index: {}]
  %s9 = inlined_call_operand.vmem [shape: f32[2], index: 9, kind: input, shape index: {}]
  %s10 = inlined_call_operand.<no memory space> [shape: f32[1], index: 10, kind: input, shape index: {}]
  %s11 = inlined_call_operand.hbm [shape: f32[1,128], index: 11, kind: output, shape index: {}]
  %s12 = sld [smem:[#allocation0]]
  $region58: #{tpu_custom_call.1} parent=0
    _
  %s14 = ssub.s32 1, %s12
  %s15 = scalar_select 0, %s14, %s12
  %16 = sst [smem:[#allocation2]] %s4
  %v17 = vstv %s8
  %18 = vst [vmem:[#allocation3] sm:$0x1] %v17
  %19 = sst [smem:[#allocation4]] %s10
  $region1: #{tpu_custom_call.1} parent=0
    #allocation5 [shape = 'u8[512]{0}', space=smem, size = 0x200, scoped, tag = 'input window, operand 9, single buffered']
    #allocation6 [shape = 's32[1]{0}', space=sflag, size = 0x4, scoped, tag = 'scoped memory for tpu_custom_call.1']
    #allocation7 [shape = 's32[1]{0}', space=sflag, size = 0x4, scoped, tag = 'scoped memory for tpu_custom_call.1']
    #allocation8 [shape = 'u8[512]{0}', space=vmem, size = 0x400, scoped, tag = 'output window, operand 0, single buffered']
    %20 = vsyncpa [#allocation7], 0
    %21 = vsyncpa [#allocation6], 0
    // Predicated region
    $region2: #{tpu_custom_call.1} parent=1 // pred_check
      _
    $region3: #{tpu_custom_call.1} parent=1 // pred_check_branch
      %23 = sbr.rel (0) target = $region5
    $region4: #{tpu_custom_call.1} parent=1 // pred_region
      _
    $region5: #{tpu_custom_call.1} parent=1 // pred_fallthru
      _
    // Predicated region
    $region6: #{tpu_custom_call.1} parent=1 // pred_check
      _
    $region7: #{tpu_custom_call.1} parent=1 // pred_check_branch
      %25 = sbr.rel (0) target = $region9
    $region8: #{tpu_custom_call.1} parent=1 // pred_region
      _
    $region9: #{tpu_custom_call.1} parent=1 // pred_fallthru
      _
    // Predicated region
    $region10: #{tpu_custom_call.1} parent=1 // pred_check
      _
    $region11: #{tpu_custom_call.1} parent=1 // pred_check_branch
      %27 = sbr.rel (0) target = $region13
    $region12: #{tpu_custom_call.1} parent=1 // pred_region
      _
    $region13: #{tpu_custom_call.1} parent=1 // pred_fallthru
      _
    // Predicated region
    $region14: #{tpu_custom_call.1} parent=1 // pred_check
      _
    $region15: #{tpu_custom_call.1} parent=1 // pred_check_branch
      %29 = sbr.rel (0) target = $region17
    $region16: #{tpu_custom_call.1} parent=1 // pred_region
      _
    $region17: #{tpu_custom_call.1} parent=1 // pred_fallthru
      _
    // Predicated region
    $region18: #{tpu_custom_call.1} parent=1 // pred_check
      _
    $region19: #{tpu_custom_call.1} parent=1 // pred_check_branch
      %31 = sbr.rel (0) target = $region21
    $region20: #{tpu_custom_call.1} parent=1 // pred_region
      _
    $region21: #{tpu_custom_call.1} parent=1 // pred_fallthru
      _
    // Predicated region
    $region22: #{tpu_custom_call.1} parent=1 // pred_check
      _
    $region23: #{tpu_custom_call.1} parent=1 // pred_check_branch
      %33 = sbr.rel (0) target = $region25
    $region24: #{tpu_custom_call.1} parent=1 // pred_region
      _
    $region25: #{tpu_custom_call.1} parent=1 // pred_fallthru
      _
    // Predicated region
    $region26: #{tpu_custom_call.1} parent=1 // pred_check
      _
    $region27: #{tpu_custom_call.1} parent=1 // pred_check_branch
      %35 = sbr.rel (0) target = $region29
    $region28: #{tpu_custom_call.1} parent=1 // pred_region
      _
    $region29: #{tpu_custom_call.1} parent=1 // pred_fallthru
      _
    // Predicated region
    $region30: #{tpu_custom_call.1} parent=1 // pred_check
      _
    $region31: #{tpu_custom_call.1} parent=1 // pred_check_branch
      %37 = sbr.rel (0) target = $region33
    $region32: #{tpu_custom_call.1} parent=1 // pred_region
      _
    $region33: #{tpu_custom_call.1} parent=1 // pred_fallthru
      _
    // Predicated region
    $region34: #{tpu_custom_call.1} parent=1 // pred_check
      _
    $region35: #{tpu_custom_call.1} parent=1 // pred_check_branch
      %39 = sbr.rel (0) target = $region37
    $region36: #{tpu_custom_call.1} parent=1 // pred_region
      _
    $region37: #{tpu_custom_call.1} parent=1 // pred_fallthru
      _
    // Predicated region
    $region38: #{tpu_custom_call.1} parent=1 // pred_check
      _
    $region39: #{tpu_custom_call.1} parent=1 // pred_check_branch
      %41 = sbr.rel (0) target = $region41
    $region40: #{tpu_custom_call.1} parent=1 // pred_region
      %43 = vsyncadd [#allocation7], 0
      %s45 = sshll.u32 %s9, 4
      %s46 = int_to_ptr.vmem [resolvable:$true] %s45
      %48 = dma.vmem_to_smem %s46, 16, [#allocation5], [#allocation7]
    $region41: #{tpu_custom_call.1} parent=1 // pred_fallthru
      _
    // Predicated region
    $region42: #{tpu_custom_call.1} parent=1 // pred_check
      _
    $region43: #{tpu_custom_call.1} parent=1 // pred_check_branch
      %50 = sbr.rel (0) target = $region45
    $region44: #{tpu_custom_call.1} parent=1 // pred_region
      _
    $region45: #{tpu_custom_call.1} parent=1 // pred_fallthru
      _
    // Predicated region
    $region46: #{tpu_custom_call.1} parent=1 // pred_check
      _
    $region47: #{tpu_custom_call.1} parent=1 // pred_check_branch
      %52 = sbr.rel (0) target = $region49
    $region48: #{tpu_custom_call.1} parent=1 // pred_region
      %54 = dma.done [#allocation7], 16
    $region49: #{tpu_custom_call.1} parent=1 // pred_fallthru
      _
    %55 = sfence
    %v56 = vld [vmem:[%s1] sm:$0xff]
    %v57 = vld [vmem:[%s1 + $0x8] sm:$0xff]
    %v58 = vld [vmem:[%s2] sm:$0xff]
    %v59 = vld [vmem:[%s2 + $0x8] sm:$0xff]
    %v60 = vld [vmem:[%s3] sm:$0xff]
    %v61 = vld [vmem:[%s3 + $0x8] sm:$0xff]
    %v62 = vld [vmem:[%s3 + $0x10] sm:$0xff]
    %v63 = vld [vmem:[%s3 + $0x18] sm:$0xff]
    %v64 = vld [vmem:[%s3 + $0x20] sm:$0xff]
    %v65 = vld [vmem:[%s3 + $0x28] sm:$0xff]
    %v66 = vld [vmem:[%s3 + $0x30] sm:$0xff]
    %v67 = vld [vmem:[%s3 + $0x38] sm:$0xff]
    %v68 = vld [vmem:[%s3 + $0x40] sm:$0x1]
    %v69 = vld [vmem:[%s0] sm:$0xff]
    %v70 = vld [vmem:[%s0 + $0x8] sm:$0xff]
    %v71 = vld [vmem:[%s0 + $0x10] sm:$0xff]
    %v72 = vld [vmem:[%s0 + $0x18] sm:$0xff]
    %v73 = vld [vmem:[%s0 + $0x20] sm:$0xff]
    %v74 = vld [vmem:[%s0 + $0x28] sm:$0x1f]
    %vm75 = vcmask 367616
    %v77 = vsel %vm75, %v60, 0
    %v80 = vsel %vm75, %v61, 0
    %v83 = vsel %vm75, %v62, 0
    %v86 = vsel %vm75, %v63, 0
    %v89 = vsel %vm75, %v64, 0
    %v92 = vsel %vm75, %v65, 0
    %v95 = vsel %vm75, %v66, 0
    %v98 = vsel %vm75, %v67, 0
    %v101 = vsel %vm75, %v68, 0
    %vm103 = vcmask 1044480
    %v105 = vsel %vm103, %v74, 0
    %107 = vmatpush.msra.mxu0 0.0
    %108 = vmatpush.msra.mxu0 0.0
    %109 = vmatpush.msra.mxu0 0.0
    %110 = vmatpush.msra.mxu0 0.0
    %111 = vmatpush.msra.mxu0 0.0
    %112 = vmatpush.msra.mxu0 0.0
    %113 = vmatpush.msra.mxu0 0.0
    %114 = vmatpush.msra.mxu0 0.0
    %115 = vmatpush.msra.mxu0 0.0
    %116 = vmatpush.msra.mxu0 0.0
    %117 = vmatpush.msra.mxu0 %v105
    %118 = vmatpush.msra.mxu0 %v73
    %119 = vmatpush.msra.mxu0 %v72
    %120 = vmatpush.msra.mxu0 %v71
    %121 = vmatpush.msra.mxu0 %v70
    %122 = vmatpush.msra.mxu0 %v69
    %123 = vmatmul.f32.gmra.mxu0 %v77
    %v124 = vpop.f32.mrf.mxu0
    %v125 = vadd.f32 0.0, %v124
    %126 = vmatmul.f32.gmra.mxu0 %v80
    %v127 = vpop.f32.mrf.mxu0
    %v128 = vadd.f32 0.0, %v127
    %129 = vmatmul.f32.gmra.mxu0 %v83
    %v130 = vpop.f32.mrf.mxu0
    %v131 = vadd.f32 0.0, %v130
    %132 = vmatmul.f32.gmra.mxu0 %v86
    %v133 = vpop.f32.mrf.mxu0
    %v134 = vadd.f32 0.0, %v133
    %135 = vmatmul.f32.gmra.mxu0 %v89
    %v136 = vpop.f32.mrf.mxu0
    %v137 = vadd.f32 0.0, %v136
    %138 = vmatmul.f32.gmra.mxu0 %v92
    %v139 = vpop.f32.mrf.mxu0
    %v140 = vadd.f32 0.0, %v139
    %141 = vmatmul.f32.gmra.mxu0 %v95
    %v142 = vpop.f32.mrf.mxu0
    %v143 = vadd.f32 0.0, %v142
    %144 = vmatmul.f32.gmra.mxu0 %v98
    %v145 = vpop.f32.mrf.mxu0
    %v146 = vadd.f32 0.0, %v145
    %147 = vmatmul.f32.gmra.mxu0 %v101
    %v148 = vpop.f32.mrf.mxu0
    %v149 = vadd.f32 0.0, %v148
    %150 = vdwg.mxu0
    %s151 = sld [smem:[#allocation2]]
    %v152 = vstv %s151
    %v153 = vadd.f32 %v149, %v152
    %v154 = vadd.f32 %v56, %v58
    %v155 = vadd.f32 %v57, %v59
    %v156 = vadd.f32 %v154, %v125
    %v157 = vadd.f32 %v155, %v128
    %v158 = vadd.f32 %v156, %v131
    %v159 = vadd.f32 %v157, %v134
    %v160 = vadd.f32 %v158, %v137
    %v161 = vadd.f32 %v159, %v140
    %v162 = vadd.f32 %v160, %v143
    %v163 = vadd.f32 %v161, %v146
    %v164 = vmul.f32 %v56, %v56
    %v165 = vmul.f32 %v57, %v57
    %v166 = vmul.f32 %v58, %v58
    %v167 = vmul.f32 %v59, %v59
    %v168 = vadd.f32 %v164, %v166
    %v169 = vadd.f32 %v165, %v167
    %v170 = vmul.f32 %v125, %v125
    %v171 = vmul.f32 %v128, %v128
    %v172 = vadd.f32 %v168, %v170
    %v173 = vadd.f32 %v169, %v171
    %v174 = vmul.f32 %v131, %v131
    %v175 = vmul.f32 %v134, %v134
    %v176 = vadd.f32 %v172, %v174
    %v177 = vadd.f32 %v173, %v175
    %v178 = vmul.f32 %v137, %v137
    %v179 = vmul.f32 %v140, %v140
    %v180 = vadd.f32 %v176, %v178
    %v181 = vadd.f32 %v177, %v179
    %v182 = vmul.f32 %v143, %v143
    %v183 = vmul.f32 %v146, %v146
    %v184 = vadd.f32 %v180, %v182
    %v185 = vadd.f32 %v181, %v183
    %v186 = vmul.f32 %v162, %v162
    %v187 = vmul.f32 %v163, %v163
    %v188 = vsub.f32 %v186, %v184
    %v189 = vsub.f32 %v187, %v185
    %v190 = vmul.f32 %v188, 0.5
    %v191 = vmul.f32 %v189, 0.5
    %v192 = vld [vmem:[%s5] sm:$0xff]
    %v193 = vld [vmem:[%s5 + $0x8] sm:$0xff]
    %v194 = vld [vmem:[%s6] sm:$0xff]
    %v195 = vld [vmem:[%s6 + $0x8] sm:$0xff]
    %197 = vset.pattern.permute.xlu0 0
    %198 = vperm.xlu0 %197, %v194
    %v199 = vpop.permute.xlu0 %198
    %202 = vset.pattern.permute.xlu0 0
    %203 = vperm.xlu0 %202, %v195
    %v204 = vpop.permute.xlu0 %203
    %vm206 = vcmask 130048
    %v208 = vsel %vm206, %v192, 0
    %v211 = vsel %vm206, %v193, 0
    %213 = vmatpush.msra.mxu0 0.0
    %214 = vmatpush.msra.mxu0 0.0
    %215 = vmatpush.msra.mxu0 0.0
    %216 = vmatpush.msra.mxu0 0.0
    %217 = vmatpush.msra.mxu0 0.0
    %218 = vmatpush.msra.mxu0 0.0
    %219 = vmatpush.msra.mxu0 0.0
    %220 = vmatpush.msra.mxu0 0.0
    %221 = vmatpush.msra.mxu0 0.0
    %222 = vmatpush.msra.mxu0 0.0
    %223 = vmatpush.msra.mxu0 0.0
    %224 = vmatpush.msra.mxu0 0.0
    %225 = vmatpush.msra.mxu0 0.0
    %226 = vmatpush.msra.mxu0 0.0
    %227 = vmatpush.msra.mxu0 %v191
    %228 = vmatpush.msra.mxu0 %v190
    %229 = vmatmul.f32.gmra.mxu0 %v208
    %v230 = vpop.f32.mrf.mxu0
    %v231 = vadd.f32 %v199, %v230
    %232 = vmatmul.f32.gmra.mxu0 %v211
    %v233 = vpop.f32.mrf.mxu0
    %v234 = vadd.f32 %v204, %v233
    %235 = vdwg.mxu0
    %v236 = vmax.f32 %v231, 0.0
    %v237 = vmax.f32 %v234, 0.0
    %v238 = vld [vmem:[%s7] sm:$0x1]
    %v239 = vld [vmem:[#allocation3] sm:$0x1]
    %241 = vset.pattern.permute.xlu0 0
    %242 = vperm.xlu0 %241, %v239
    %v243 = vpop.permute.xlu0 %242
    %v245 = vperm.slane %v243, 0
    %v247 = vsel %vm206, %v238, 0
    %249 = vmatpush.msra.mxu0 0.0
    %250 = vmatpush.msra.mxu0 0.0
    %251 = vmatpush.msra.mxu0 0.0
    %252 = vmatpush.msra.mxu0 0.0
    %253 = vmatpush.msra.mxu0 0.0
    %254 = vmatpush.msra.mxu0 0.0
    %255 = vmatpush.msra.mxu0 0.0
    %256 = vmatpush.msra.mxu0 0.0
    %257 = vmatpush.msra.mxu0 0.0
    %258 = vmatpush.msra.mxu0 0.0
    %259 = vmatpush.msra.mxu0 0.0
    %260 = vmatpush.msra.mxu0 0.0
    %261 = vmatpush.msra.mxu0 0.0
    %262 = vmatpush.msra.mxu0 0.0
    %263 = vmatpush.msra.mxu0 %v237
    %264 = vmatpush.msra.mxu0 %v236
    %265 = vmatmul.f32.gmra.mxu0 %v247
    %v266 = vpop.f32.mrf.mxu0
    %v267 = vadd.f32 %v245, %v266
    %268 = vdwg.mxu0
    %v269 = vmax.f32 %v267, 0.0
    %s270 = sld [smem:[#allocation5]]
    %v271 = vstv %s270
    %v272 = vmul.f32 %v153, %v271
    %s273 = sld [smem:[#allocation5 + $0x1]]
    %v274 = vstv %s273
    %v275 = vmul.f32 %v269, %v274
    %v276 = vadd.f32 %v272, %v275
    %s277 = sld [smem:[#allocation4]]
    %v278 = vstv %s277
    %v279 = vadd.f32 %v276, %v278
    %v280 = vxor.u32 %v279, 2147483648
    %v281 = vmul.f32 %v280, 1.442695
    %v282 = vpow.pop %v281
    %v283 = vadd.f32 %v282, 1.0
    %v284 = vrcp.pop %v283
    %v285 = vmul.f32 %v283, %v284
    %v286 = vsub.f32 1.0, %v285
    %v287 = vmul.f32 %v284, %v286
    %v288 = vadd.f32 %v284, %v287
    %vm289 = vweird.f32 %v283
    %vm290 = vweird.f32 %v284
    %vm291 = vmor %vm289, %vm290
    %v292 = vsel %vm291, %v284, %v288
    %v293 = vand.u32 2147483647, %v283
    %vm294 = vcmp.eq.f32.partialorder %v293, 8.507059e+37
    %v295 = vand.u32 %v283, 2147483648
    %v296 = vor.u32 1.1754944e-38, %v295
    %v297 = vsel %vm294, %v296, %v292
    %v298 = vmul.f32 1.0, %v297
    %299 = vst [vmem:[#allocation8] sm:$0x1] %v298
    // Predicated region
    $region50: #{tpu_custom_call.1} parent=1 // pred_check
      _
    $region51: #{tpu_custom_call.1} parent=1 // pred_check_branch
      %301 = sbr.rel (0) target = $region53
    $region52: #{tpu_custom_call.1} parent=1 // pred_region
      %303 = vsyncadd [#allocation6], 0
      %s305 = sshll.u32 [#allocation8], 4
      %s306 = int_to_ptr.vmem [resolvable:$true] %s305
      %s307 = sshll.u32 %s11, 4
      %s308 = int_to_ptr.hbm [resolvable:$true] %s307
      %310 = dma.vmem_to_hbm [thread:$0]  %s306, 16, %s308, [#allocation6]
    $region53: #{tpu_custom_call.1} parent=1 // pred_fallthru
      _
    // Predicated region
    $region54: #{tpu_custom_call.1} parent=1 // pred_check
      _
    $region55: #{tpu_custom_call.1} parent=1 // pred_check_branch
      %312 = sbr.rel (0) target = $region57
    $region56: #{tpu_custom_call.1} parent=1 // pred_region
      %314 = dma.done [#allocation6], 16
    $region57: #{tpu_custom_call.1} parent=1 // pred_fallthru
      _
    %315 = vsyncpa [#allocation6], 1
    %316 = vsyncpa [#allocation7], 1

</llo_original>
